<compile_context>
chip_gen: v7x
topology: tpu7x:2x2x1
jax: 0.10.0
libtpu: 0.0.40
codegen_flags: <defaults>
</compile_context>

<pallas_src>
import functools

import numpy as np
import jax
import jax.numpy as jnp
from jax.experimental import pallas as pl
from jax.experimental.pallas import tpu as pltpu

LANE = 128


def _round_up(n, m):
    return ((n + m - 1) // m) * m


def mlp_kernel(x_ref, w1_ref, b1_ref, w2_ref, b2_ref, o_ref):
    # x arrives as f32 straight from HBM (no wrapper-side bf16 copy pass);
    # the bf16 cast for the MXU rides free VALU slack inside the kernel.
    x = x_ref[...].astype(jnp.bfloat16)
    # Linear 1: bf16 MXU matmul, f32 accumulate; bias + ReLU on the VPU in f32.
    h = jnp.dot(x, w1_ref[...], preferred_element_type=jnp.float32)
    h = jnp.maximum(h + b1_ref[...], 0.0)
    # Dropout(p=0.3): identity in eval/inference mode.
    # TODO(synk): training-mode dropout (pltpu.prng_* Bernoulli mask + 1/(1-p)
    # scaling) is intentionally not implemented; see `training` guard below.
    # Linear 2: bf16 MXU matmul, f32 accumulate; bias add in f32.
    out = jnp.dot(h.astype(jnp.bfloat16), w2_ref[...],
                  preferred_element_type=jnp.float32)
    # Zero-padded hidden/class columns are mathematically exact:
    # ReLU(0 + 0) = 0 and padded class columns are sliced off in the wrapper.
    o_ref[...] = (out + b2_ref[...]).astype(o_ref.dtype)


def init_params(key, input_dim=128, hidden=64, num_classes=18):
    # Deterministic init mimicking nn.Linear: U(-1/sqrt(fan_in), 1/sqrt(fan_in)).
    # Weights stored as (in_features, out_features), i.e. nn.Linear.weight.T.
    k1, k2, k3, k4 = jax.random.split(key, 4)
    bound1 = 1.0 / jnp.sqrt(input_dim)
    bound2 = 1.0 / jnp.sqrt(hidden)
    w1 = jax.random.uniform(k1, (input_dim, hidden), jnp.float32, -bound1, bound1)
    b1 = jax.random.uniform(k2, (1, hidden), jnp.float32, -bound1, bound1)
    w2 = jax.random.uniform(k3, (hidden, num_classes), jnp.float32, -bound2, bound2)
    b2 = jax.random.uniform(k4, (1, num_classes), jnp.float32, -bound2, bound2)
    return w1, b1, w2, b2


def prepare_params(w1, b1, w2, b2):
    """One-time padding/casting of the static weights (hoisted off the hot path).

    Feature dims are zero-padded to 128 lanes; matmul operands are bf16,
    biases stay f32.
    """
    D, H = w1.shape
    C = w2.shape[1]
    d_pad = _round_up(D, LANE)
    h_pad = _round_up(H, LANE)
    c_pad = _round_up(C, LANE)

    w1_p = jnp.zeros((d_pad, h_pad), jnp.bfloat16).at[:D, :H].set(
        w1.astype(jnp.bfloat16))
    b1_p = jnp.zeros((1, h_pad), jnp.float32).at[:, :H].set(
        b1.astype(jnp.float32))
    w2_p = jnp.zeros((h_pad, c_pad), jnp.bfloat16).at[:H, :C].set(
        w2.astype(jnp.bfloat16))
    b2_p = jnp.zeros((1, c_pad), jnp.float32).at[:, :C].set(
        b2.astype(jnp.float32))
    return {
        "w1": w1_p, "b1": b1_p, "w2": w2_p, "b2": b2_p,
        "input_dim": D, "hidden": H, "num_classes": C,
    }


@functools.partial(jax.jit,
                   static_argnames=("block_rows", "out_dtype", "num_classes"))
def _mlp_forward(x, w1_p, b1_p, w2_p, b2_p, *, block_rows, out_dtype,
                 num_classes):
    B, D = x.shape
    d_pad, h_pad = w1_p.shape
    c_pad = w2_p.shape[1]
    C = num_classes

    # Batch tiling. Sub-32-bit output packs 2 rows per sublane, so keep the
    # tile a multiple of 16 rows when the output is bf16.
    sub = 16 if np.dtype(out_dtype).itemsize < 4 else 8
    b8 = _round_up(max(B, sub), sub)
    tb = min(_round_up(block_rows, sub), b8)
    # Guarantee >=2 grid steps when the batch allows it, so the "parallel"
    # batch axis can shard across both v7x TensorCores.
    if b8 >= 2 * sub and (b8 // tb) < 2:
        tb = _round_up(b8 // 2, sub)
    b_pad = _round_up(b8, tb)

    # No wrapper-side cast of x; only zero-pad rows/cols if strictly needed
    # (no-op when B is already tile-aligned and D == d_pad).
    x_p = x
    if b_pad != B or d_pad != D:
        x_p = jnp.pad(x, ((0, b_pad - B), (0, d_pad - D)))

    grid = (b_pad // tb,)
    out_itemsize = np.dtype(out_dtype).itemsize
    flops = 2 * b_pad * (d_pad * h_pad + h_pad * c_pad)
    bytes_accessed = (x_p.size * x_p.dtype.itemsize       # f32 x read
                      + w1_p.size * 2 + w2_p.size * 2     # bf16 weights
                      + b1_p.size * 4 + b2_p.size * 4     # f32 biases
                      + b_pad * c_pad * out_itemsize)     # bf16 writeback

    out_padded = pl.pallas_call(
        mlp_kernel,
        out_shape=jax.ShapeDtypeStruct((b_pad, c_pad), out_dtype),
        grid_spec=pl.GridSpec(
            grid=grid,
            in_specs=[
                pl.BlockSpec((tb, d_pad), lambda i: (i, 0)),      # x tile (f32)
                pl.BlockSpec((d_pad, h_pad), lambda i: (0, 0)),   # w1 resident
                pl.BlockSpec((1, h_pad), lambda i: (0, 0)),       # b1 resident
                pl.BlockSpec((h_pad, c_pad), lambda i: (0, 0)),   # w2 resident
                pl.BlockSpec((1, c_pad), lambda i: (0, 0)),       # b2 resident
            ],
            out_specs=pl.BlockSpec((tb, c_pad), lambda i: (i, 0)),
        ),
        compiler_params=pltpu.CompilerParams(
            dimension_semantics=("parallel",),
            vmem_limit_bytes=32 * 1024 * 1024,
        ),
        cost_estimate=pl.CostEstimate(
            flops=flops, transcendentals=0, bytes_accessed=bytes_accessed),
    )(x_p, w1_p, b1_p, w2_p, b2_p)

    return out_padded[:B, :C]


def mlp_classifier(x, params, *, block_rows=4096, out_dtype=jnp.bfloat16,
                   training=False):
    """Fused MLP forward (inference). x: (B, D) f32 -> (B, C) logits.

    Note: default out_dtype is bf16 (halved writeback); logits lose ~3 decimal
    digits of precision — fine for argmax/softmax classification. Pass
    out_dtype=jnp.float32 if full-precision logits are required.
    """
    if training:
        raise NotImplementedError(
            "Dropout(0.3) training mode is not implemented; inference only.")
    return _mlp_forward(x, params["w1"], params["b1"], params["w2"],
                        params["b2"], block_rows=block_rows,
                        out_dtype=out_dtype,
                        num_classes=params["num_classes"])


def _reference_bf16(x, w1, b1, w2, b2):
    # Mirrors the kernel's numerics: bf16 matmul operands, f32 accumulate,
    # f32 bias/ReLU epilogue. Dropout is identity (eval mode).
    hi = jax.lax.Precision.HIGHEST
    xb = x.astype(jnp.bfloat16).astype(jnp.float32)
    w1b = w1.astype(jnp.bfloat16).astype(jnp.float32)
    w2b = w2.astype(jnp.bfloat16).astype(jnp.float32)
    h = jnp.maximum(jnp.dot(xb, w1b, precision=hi) + b1, 0.0)
    hb = h.astype(jnp.bfloat16).astype(jnp.float32)
    return jnp.dot(hb, w2b, precision=hi) + b2


def _reference_f32(x, w1, b1, w2, b2):
    # True f32 PyTorch-equivalent forward (eval mode).
    hi = jax.lax.Precision.HIGHEST
    h = jnp.maximum(jnp.dot(x, w1, precision=hi) + b1, 0.0)
    return jnp.dot(h, w2, precision=hi) + b2


if __name__ == "__main__":
    key = jax.random.PRNGKey(0)
    kx, kp = jax.random.split(key)

    B, input_dim, hidden, num_classes = 16, 128, 64, 18
    x = jax.random.normal(kx, (B, input_dim), jnp.float32)
    w1, b1, w2, b2 = init_params(kp, input_dim, hidden, num_classes)
    params = prepare_params(w1, b1, w2, b2)

    out = mlp_classifier(x, params)
    out = jax.block_until_ready(out)
    assert out.shape == (B, num_classes)

    out_f32 = out.astype(jnp.float32)
    # Check against a reference that mirrors the kernel's bf16/f32 numerics.
    ref_mirror = _reference_bf16(x, w1, b1, w2, b2)
    assert jnp.allclose(out_f32, ref_mirror, atol=2e-2, rtol=2e-2)
    # Direct check against the true f32 module (loose tolerance: bf16 operands
    # + bf16 logits).
    ref_f32 = _reference_f32(x, w1, b1, w2, b2)
    assert jnp.allclose(out_f32, ref_f32, atol=6e-2, rtol=6e-2)

    print("KERNEL_OK")
</pallas_src>

<mosaic_0001>
module attributes {stable_mosaic.version = 11 : i64} {
  func.func @mlp_kernel(%arg0: i32, %arg1: memref<16x128xf32, #tpu.memory_space<vmem>>, %arg2: memref<128x128xbf16, #tpu.memory_space<vmem>>, %arg3: memref<1x128xf32, #tpu.memory_space<vmem>>, %arg4: memref<128x128xbf16, #tpu.memory_space<vmem>>, %arg5: memref<1x128xf32, #tpu.memory_space<vmem>>, %arg6: memref<16x128xbf16, #tpu.memory_space<vmem>>) attributes {dimension_semantics = [#tpu.dimension_semantics<parallel>], iteration_bounds = array<i64: 1>, scalar_prefetch = 0 : i64, scratch_operands = 0 : i64, tpu.core_type = #tpu.core_type<tc>, window_params = [{transform_indices = @transform_0, window_bounds = array<i64: 16, 128>}, {pipeline_mode = #tpu.pipeline_mode<synchronous>, transform_indices = @transform_1, window_bounds = array<i64: 128, 128>}, {pipeline_mode = #tpu.pipeline_mode<synchronous>, transform_indices = @transform_2, window_bounds = array<i64: 1, 128>}, {pipeline_mode = #tpu.pipeline_mode<synchronous>, transform_indices = @transform_3, window_bounds = array<i64: 128, 128>}, {pipeline_mode = #tpu.pipeline_mode<synchronous>, transform_indices = @transform_4, window_bounds = array<i64: 1, 128>}, {transform_indices = @transform_5, window_bounds = array<i64: 16, 128>}]} {
    %c0 = arith.constant 0 : index
    %c0_0 = arith.constant 0 : index
    %0 = vector.load %arg1[%c0, %c0_0] : memref<16x128xf32, #tpu.memory_space<vmem>>, vector<16x128xf32>
    %1 = arith.truncf %0 : vector<16x128xf32> to vector<16x128xbf16>
    %c0_1 = arith.constant 0 : index
    %c0_2 = arith.constant 0 : index
    %2 = vector.load %arg2[%c0_1, %c0_2] : memref<128x128xbf16, #tpu.memory_space<vmem>>, vector<128x128xbf16>
    %cst = arith.constant dense<0.000000e+00> : vector<16x128xf32>
    %3 = tpu.matmul %1, %2, %cst {dimension_numbers = #tpu.dot_dimension_numbers<[1], [0], [0], [1], [0, 0, 1, 1], [], []>} : vector<16x128xbf16>, vector<128x128xbf16>, vector<16x128xf32> -> vector<16x128xf32>
    %c0_3 = arith.constant 0 : index
    %c0_4 = arith.constant 0 : index
    %4 = vector.load %arg3[%c0_3, %c0_4] : memref<1x128xf32, #tpu.memory_space<vmem>>, vector<1x128xf32>
    %5 = vector.broadcast %4 : vector<1x128xf32> to vector<16x128xf32>
    %6 = arith.addf %3, %5 : vector<16x128xf32>
    %cst_5 = arith.constant 0.000000e+00 : f32
    %7 = vector.broadcast %cst_5 : f32 to vector<16x128xf32>
    %8 = arith.maximumf %6, %7 : vector<16x128xf32>
    %9 = arith.truncf %8 : vector<16x128xf32> to vector<16x128xbf16>
    %c0_6 = arith.constant 0 : index
    %c0_7 = arith.constant 0 : index
    %10 = vector.load %arg4[%c0_6, %c0_7] : memref<128x128xbf16, #tpu.memory_space<vmem>>, vector<128x128xbf16>
    %cst_8 = arith.constant dense<0.000000e+00> : vector<16x128xf32>
    %11 = tpu.matmul %9, %10, %cst_8 {dimension_numbers = #tpu.dot_dimension_numbers<[1], [0], [0], [1], [0, 0, 1, 1], [], []>} : vector<16x128xbf16>, vector<128x128xbf16>, vector<16x128xf32> -> vector<16x128xf32>
    %c0_9 = arith.constant 0 : index
    %c0_10 = arith.constant 0 : index
    %12 = vector.load %arg5[%c0_9, %c0_10] : memref<1x128xf32, #tpu.memory_space<vmem>>, vector<1x128xf32>
    %13 = vector.broadcast %12 : vector<1x128xf32> to vector<16x128xf32>
    %14 = arith.addf %11, %13 : vector<16x128xf32>
    %15 = arith.truncf %14 : vector<16x128xf32> to vector<16x128xbf16>
    %c0_11 = arith.constant 0 : index
    %c0_12 = arith.constant 0 : index
    %16 = vector.load %arg6[%c0_11, %c0_12] : memref<16x128xbf16, #tpu.memory_space<vmem>>, vector<16x128xbf16>
    tpu.vector_store %arg6[%c0_11, %c0_12], %15 {strides = array<i32>} : memref<16x128xbf16, #tpu.memory_space<vmem>>, vector<16x128xbf16>,
    return
  }
  func.func @transform_0(%arg0: i32) -> (i32, i32) {
    %c0_i32 = arith.constant 0 : i32
    %c0_i32_0 = arith.constant 0 : i32
    return %arg0, %c0_i32 : i32, i32
  }
  func.func @transform_1(%arg0: i32) -> (i32, i32) {
    %c0_i32 = arith.constant 0 : i32
    %c0_i32_0 = arith.constant 0 : i32
    %c0_i32_1 = arith.constant 0 : i32
    return %c0_i32, %c0_i32_0 : i32, i32
  }
  func.func @transform_2(%arg0: i32) -> (i32, i32) {
    %c0_i32 = arith.constant 0 : i32
    %c0_i32_0 = arith.constant 0 : i32
    %c0_i32_1 = arith.constant 0 : i32
    return %c0_i32, %c0_i32_0 : i32, i32
  }
  func.func @transform_3(%arg0: i32) -> (i32, i32) {
    %c0_i32 = arith.constant 0 : i32
    %c0_i32_0 = arith.constant 0 : i32
    %c0_i32_1 = arith.constant 0 : i32
    return %c0_i32, %c0_i32_0 : i32, i32
  }
  func.func @transform_4(%arg0: i32) -> (i32, i32) {
    %c0_i32 = arith.constant 0 : i32
    %c0_i32_0 = arith.constant 0 : i32
    %c0_i32_1 = arith.constant 0 : i32
    return %c0_i32, %c0_i32_0 : i32, i32
  }
  func.func @transform_5(%arg0: i32) -> (i32, i32) {
    %c0_i32 = arith.constant 0 : i32
    %c0_i32_0 = arith.constant 0 : i32
    return %arg0, %c0_i32 : i32, i32
  }
}

</mosaic_0001>

<llo_original>
// kernel: _mlp_forward.1
$region0: #{_mlp_forward.1}
  #allocation0 [shape = 'u32[]', space=smem, size = 0x4, offset = 0x4, fixed_abs, tag = 'smem constant byte address 0x4 - core index']
  #allocation1 [shape = 'u32[144,128]{1,0:T(1,128)}', space=vmem, size = 0x12000, scoped, tag = 'internal scratch']
  %s0 = inlined_call_operand.hbm [shape: f32[16,128], index: 0, kind: input, shape index: {}]
  %s1 = inlined_call_operand.hbm [shape: bf16[128,128], index: 1, kind: input, shape index: {}]
  %s2 = inlined_call_operand.vmem [shape: f32[1,128], index: 2, kind: input, shape index: {}]
  %s3 = inlined_call_operand.hbm [shape: bf16[128,128], index: 3, kind: input, shape index: {}]
  %s4 = inlined_call_operand.vmem [shape: f32[1,128], index: 4, kind: input, shape index: {}]
  %s5 = inlined_call_operand.hbm [shape: bf16[16,128], index: 5, kind: output, shape index: {}]
  %s6 = sld [smem:[#allocation0]]
  $region42: #{_mlp_forward.1} parent=0
    _
  %s8 = ssub.s32 1, %s6
  %s9 = scalar_select 0, %s8, %s6
  $region1: #{_mlp_forward.1} parent=0
    #allocation2 [shape = 'u8[8192]{0}', space=vmem, size = 0x2000, scoped, tag = 'input window, operand 0, single buffered']
    #allocation3 [shape = 's32[1]{0}', space=sflag, size = 0x4, scoped, tag = 'scoped memory for _mlp_forward.1']
    #allocation4 [shape = 's32[1]{0}', space=sflag, size = 0x4, scoped, tag = 'scoped memory for _mlp_forward.1']
    #allocation5 [shape = 'u8[32768]{0}', space=vmem, size = 0x8000, scoped, tag = 'input window, operand 1, single buffered']
    #allocation6 [shape = 's32[1]{0}', space=sflag, size = 0x4, scoped, tag = 'scoped memory for _mlp_forward.1']
    #allocation7 [shape = 'u8[32768]{0}', space=vmem, size = 0x8000, scoped, tag = 'input window, operand 3, single buffered']
    #allocation8 [shape = 'u8[4096]{0}', space=vmem, size = 0x1000, scoped, tag = 'output window, operand 0, single buffered']
    %10 = vsyncpa [#allocation3], 0
    %11 = vsyncpa [#allocation6], 0
    %12 = vsyncpa [#allocation4], 0
    // Predicated region
    $region2: #{_mlp_forward.1} parent=1 // pred_check
      _
    $region3: #{_mlp_forward.1} parent=1 // pred_check_branch
      %14 = sbr.rel (0) target = $region5
    $region4: #{_mlp_forward.1} parent=1 // pred_region
      %s16 = ssub.s32 256, 256
      %17 = vsyncadd [#allocation3], %s16
      %s18 = sshll.u32 [#allocation2], 4
      %s19 = int_to_ptr.vmem [resolvable:$true] %s18
      %24 = dma.hbm_to_vmem [thread:$0]  %s0, 256, %s19, [#allocation3], 128, 128, 8
    $region5: #{_mlp_forward.1} parent=1 // pred_fallthru
      _
    // Predicated region
    $region6: #{_mlp_forward.1} parent=1 // pred_check
      _
    $region7: #{_mlp_forward.1} parent=1 // pred_check_branch
      %26 = sbr.rel (0) target = $region9
    $region8: #{_mlp_forward.1} parent=1 // pred_region
      %s28 = ssub.s32 1024, 1024
      %29 = vsyncadd [#allocation6], %s28
      %s30 = sshll.u32 [#allocation5], 4
      %s31 = int_to_ptr.vmem [resolvable:$true] %s30
      %36 = dma.hbm_to_vmem [thread:$0]  %s1, 1024, %s31, [#allocation6], 64, 64, 4
    $region9: #{_mlp_forward.1} parent=1 // pred_fallthru
      _
    // Predicated region
    $region10: #{_mlp_forward.1} parent=1 // pred_check
      _
    $region11: #{_mlp_forward.1} parent=1 // pred_check_branch
      %38 = sbr.rel (0) target = $region13
    $region12: #{_mlp_forward.1} parent=1 // pred_region
      _
    $region13: #{_mlp_forward.1} parent=1 // pred_fallthru
      _
    // Predicated region
    $region14: #{_mlp_forward.1} parent=1 // pred_check
      _
    $region15: #{_mlp_forward.1} parent=1 // pred_check_branch
      %40 = sbr.rel (0) target = $region17
    $region16: #{_mlp_forward.1} parent=1 // pred_region
      %s42 = ssub.s32 1024, 1024
      %43 = vsyncadd [#allocation6], %s42
      %s44 = sshll.u32 [#allocation7], 4
      %s45 = int_to_ptr.vmem [resolvable:$true] %s44
      %50 = dma.hbm_to_vmem [thread:$0]  %s3, 1024, %s45, [#allocation6], 64, 64, 4
    $region17: #{_mlp_forward.1} parent=1 // pred_fallthru
      _
    // Predicated region
    $region18: #{_mlp_forward.1} parent=1 // pred_check
      _
    $region19: #{_mlp_forward.1} parent=1 // pred_check_branch
      %52 = sbr.rel (0) target = $region21
    $region20: #{_mlp_forward.1} parent=1 // pred_region
      _
    $region21: #{_mlp_forward.1} parent=1 // pred_fallthru
      _
    // Predicated region
    $region22: #{_mlp_forward.1} parent=1 // pred_check
      _
    $region23: #{_mlp_forward.1} parent=1 // pred_check_branch
      %54 = sbr.rel (0) target = $region25
    $region24: #{_mlp_forward.1} parent=1 // pred_region
      %55 = dma.done [#allocation3], 256
    $region25: #{_mlp_forward.1} parent=1 // pred_fallthru
      _
    // Predicated region
    $region26: #{_mlp_forward.1} parent=1 // pred_check
      _
    $region27: #{_mlp_forward.1} parent=1 // pred_check_branch
      %57 = sbr.rel (0) target = $region29
    $region28: #{_mlp_forward.1} parent=1 // pred_region
      %58 = dma.done [#allocation6], 1024
    $region29: #{_mlp_forward.1} parent=1 // pred_fallthru
      _
    // Predicated region
    $region30: #{_mlp_forward.1} parent=1 // pred_check
      _
    $region31: #{_mlp_forward.1} parent=1 // pred_check_branch
      %60 = sbr.rel (0) target = $region33
    $region32: #{_mlp_forward.1} parent=1 // pred_region
      %61 = dma.done [#allocation6], 1024
    $region33: #{_mlp_forward.1} parent=1 // pred_fallthru
      _
    %v63 = vld [vmem:[#allocation2] sm:$0xff]
    %v64 = vld [vmem:[#allocation2 + $0x8] sm:$0xff]
    %v65 = vpack.c.bf16 %v64, %v63
    %v66 = vld [vmem:[#allocation5] sm:$0xf]
    %v67 = vld [vmem:[#allocation5 + $0x4] sm:$0xf]
    %v68 = vld [vmem:[#allocation5 + $0x8] sm:$0xf]
    %v69 = vld [vmem:[#allocation5 + $0xc] sm:$0xf]
    %v70 = vld [vmem:[#allocation5 + $0x10] sm:$0xf]
    %v71 = vld [vmem:[#allocation5 + $0x14] sm:$0xf]
    %v72 = vld [vmem:[#allocation5 + $0x18] sm:$0xf]
    %v73 = vld [vmem:[#allocation5 + $0x1c] sm:$0xf]
    %v74 = vld [vmem:[#allocation5 + $0x20] sm:$0xf]
    %v75 = vld [vmem:[#allocation5 + $0x24] sm:$0xf]
    %v76 = vld [vmem:[#allocation5 + $0x28] sm:$0xf]
    %v77 = vld [vmem:[#allocation5 + $0x2c] sm:$0xf]
    %v78 = vld [vmem:[#allocation5 + $0x30] sm:$0xf]
    %v79 = vld [vmem:[#allocation5 + $0x34] sm:$0xf]
    %v80 = vld [vmem:[#allocation5 + $0x38] sm:$0xf]
    %v81 = vld [vmem:[#allocation5 + $0x3c] sm:$0xf]
    %v82 = vld [vmem:[%s2] sm:$0x1]
    %v84 = vlaneseq
    %v85 = vshrl.u32 %v84, 7
    %v86 = vsub.s32 0, %v85
    %v87 = vrot.slane %v82, %v86
    %v105 = vunpack.c.l.b16 %v66
    %v106 = vunpack.c.l.b16 %v67
    %v107 = vunpack.c.l.b16 %v68
    %v108 = vunpack.c.l.b16 %v69
    %v109 = vunpack.c.l.b16 %v70
    %v110 = vunpack.c.l.b16 %v71
    %v111 = vunpack.c.l.b16 %v72
    %v112 = vunpack.c.l.b16 %v73
    %v113 = vunpack.c.l.b16 %v74
    %v114 = vunpack.c.l.b16 %v75
    %v115 = vunpack.c.l.b16 %v76
    %v116 = vunpack.c.l.b16 %v77
    %v117 = vunpack.c.l.b16 %v78
    %v118 = vunpack.c.l.b16 %v79
    %v119 = vunpack.c.l.b16 %v80
    %v120 = vunpack.c.l.b16 %v81
    %v121 = vpack.c.b16 %v106, %v105
    %v122 = vpack.c.b16 %v108, %v107
    %v123 = vpack.c.b16 %v110, %v109
    %v124 = vpack.c.b16 %v112, %v111
    %v125 = vpack.c.b16 %v114, %v113
    %v126 = vpack.c.b16 %v116, %v115
    %v127 = vpack.c.b16 %v118, %v117
    %v128 = vpack.c.b16 %v120, %v119
    %137 = vmatprep.subr.bf16.mxu0 0
    %138 = vmatpush1.bf16.msra.mxu0 %v121
    %139 = vmatprep.subr.bf16.mxu0 0
    %140 = vmatpush1.bf16.msra.mxu0 %v122
    %141 = vmatprep.subr.bf16.mxu0 0
    %142 = vmatpush1.bf16.msra.mxu0 %v123
    %143 = vmatprep.subr.bf16.mxu0 0
    %144 = vmatpush1.bf16.msra.mxu0 %v124
    %145 = vmatprep.subr.bf16.mxu0 0
    %146 = vmatpush1.bf16.msra.mxu0 %v125
    %147 = vmatprep.subr.bf16.mxu0 0
    %148 = vmatpush1.bf16.msra.mxu0 %v126
    %149 = vmatprep.subr.bf16.mxu0 0
    %150 = vmatpush1.bf16.msra.mxu0 %v127
    %151 = vmatprep.subr.bf16.mxu0 0
    %152 = vmatpush1.bf16.msra.mxu0 %v128
    %153 = vmatprep.subr.bf16.mxu0 0
    %154 = vmatpush1.bf16.msra.mxu0 0
    %155 = vmatprep.subr.bf16.mxu0 0
    %156 = vmatpush1.bf16.msra.mxu0 0
    %157 = vmatprep.subr.bf16.mxu0 0
    %158 = vmatpush1.bf16.msra.mxu0 0
    %159 = vmatprep.subr.bf16.mxu0 0
    %160 = vmatpush1.bf16.msra.mxu0 0
    %161 = vmatprep.subr.bf16.mxu0 0
    %162 = vmatpush1.bf16.msra.mxu0 0
    %163 = vmatprep.subr.bf16.mxu0 0
    %164 = vmatpush1.bf16.msra.mxu0 0
    %165 = vmatprep.subr.bf16.mxu0 0
    %166 = vmatpush1.bf16.msra.mxu0 0
    %167 = vmatprep.subr.bf16.mxu0 0
    %168 = vmatpush1.bf16.msra.mxu0 0
    %169 = vmatprep.mubr.bf16.mxu0 0
    %170 = vmatmul.mubr.bf16.gmra.mrb[0].mxu0 %v65
    %v171 = vpop.f32.mrb[0].mxu0
    %v172 = vadd.f32 %v87, %v171
    %v173 = vpop.f32.mrb[0].mxu0
    %v174 = vpop.f32.mrb[0].mxu0
    %v175 = vadd.f32 %v87, %v174
    %v176 = vpop.f32.mrb[0].mxu0
    %177 = vdwg.mxu0
    %v178 = vmax.f32 %v172, 0.0
    %v179 = vmax.f32 %v175, 0.0
    %v180 = vpack.c.bf16 %v179, %v178
    %v181 = vld [vmem:[#allocation7] sm:$0xf]
    %v182 = vld [vmem:[#allocation7 + $0x4] sm:$0xf]
    %v183 = vld [vmem:[#allocation7 + $0x8] sm:$0xf]
    %v184 = vld [vmem:[#allocation7 + $0xc] sm:$0xf]
    %v185 = vld [vmem:[#allocation7 + $0x10] sm:$0xf]
    %v186 = vld [vmem:[#allocation7 + $0x14] sm:$0xf]
    %v187 = vld [vmem:[#allocation7 + $0x18] sm:$0xf]
    %v188 = vld [vmem:[#allocation7 + $0x1c] sm:$0xf]
    %v189 = vld [vmem:[#allocation7 + $0x20] sm:$0xf]
    %v190 = vld [vmem:[#allocation7 + $0x24] sm:$0xf]
    %v191 = vld [vmem:[#allocation7 + $0x28] sm:$0xf]
    %v192 = vld [vmem:[#allocation7 + $0x2c] sm:$0xf]
    %v193 = vld [vmem:[#allocation7 + $0x30] sm:$0xf]
    %v194 = vld [vmem:[#allocation7 + $0x34] sm:$0xf]
    %v195 = vld [vmem:[#allocation7 + $0x38] sm:$0xf]
    %v196 = vld [vmem:[#allocation7 + $0x3c] sm:$0xf]
    %v197 = vld [vmem:[%s4] sm:$0x1]
    %v199 = vlaneseq
    %v200 = vshrl.u32 %v199, 7
    %v201 = vsub.s32 0, %v200
    %v202 = vrot.slane %v197, %v201
    %v220 = vunpack.c.l.b16 %v181
    %v221 = vunpack.c.l.b16 %v182
    %v222 = vunpack.c.l.b16 %v183
    %v223 = vunpack.c.l.b16 %v184
    %v224 = vunpack.c.l.b16 %v185
    %v225 = vunpack.c.l.b16 %v186
    %v226 = vunpack.c.l.b16 %v187
    %v227 = vunpack.c.l.b16 %v188
    %v228 = vunpack.c.l.b16 %v189
    %v229 = vunpack.c.l.b16 %v190
    %v230 = vunpack.c.l.b16 %v191
    %v231 = vunpack.c.l.b16 %v192
    %v232 = vunpack.c.l.b16 %v193
    %v233 = vunpack.c.l.b16 %v194
    %v234 = vunpack.c.l.b16 %v195
    %v235 = vunpack.c.l.b16 %v196
    %v236 = vpack.c.b16 %v221, %v220
    %v237 = vpack.c.b16 %v223, %v222
    %v238 = vpack.c.b16 %v225, %v224
    %v239 = vpack.c.b16 %v227, %v226
    %v240 = vpack.c.b16 %v229, %v228
    %v241 = vpack.c.b16 %v231, %v230
    %v242 = vpack.c.b16 %v233, %v232
    %v243 = vpack.c.b16 %v235, %v234
    %252 = vmatprep.subr.bf16.mxu0 0
    %253 = vmatpush1.bf16.msra.mxu0 %v236
    %254 = vmatprep.subr.bf16.mxu0 0
    %255 = vmatpush1.bf16.msra.mxu0 %v237
    %256 = vmatprep.subr.bf16.mxu0 0
    %257 = vmatpush1.bf16.msra.mxu0 %v238
    %258 = vmatprep.subr.bf16.mxu0 0
    %259 = vmatpush1.bf16.msra.mxu0 %v239
    %260 = vmatprep.subr.bf16.mxu0 0
    %261 = vmatpush1.bf16.msra.mxu0 %v240
    %262 = vmatprep.subr.bf16.mxu0 0
    %263 = vmatpush1.bf16.msra.mxu0 %v241
    %264 = vmatprep.subr.bf16.mxu0 0
    %265 = vmatpush1.bf16.msra.mxu0 %v242
    %266 = vmatprep.subr.bf16.mxu0 0
    %267 = vmatpush1.bf16.msra.mxu0 %v243
    %268 = vmatprep.subr.bf16.mxu0 0
    %269 = vmatpush1.bf16.msra.mxu0 0
    %270 = vmatprep.subr.bf16.mxu0 0
    %271 = vmatpush1.bf16.msra.mxu0 0
    %272 = vmatprep.subr.bf16.mxu0 0
    %273 = vmatpush1.bf16.msra.mxu0 0
    %274 = vmatprep.subr.bf16.mxu0 0
    %275 = vmatpush1.bf16.msra.mxu0 0
    %276 = vmatprep.subr.bf16.mxu0 0
    %277 = vmatpush1.bf16.msra.mxu0 0
    %278 = vmatprep.subr.bf16.mxu0 0
    %279 = vmatpush1.bf16.msra.mxu0 0
    %280 = vmatprep.subr.bf16.mxu0 0
    %281 = vmatpush1.bf16.msra.mxu0 0
    %282 = vmatprep.subr.bf16.mxu0 0
    %283 = vmatpush1.bf16.msra.mxu0 0
    %284 = vmatprep.mubr.bf16.mxu0 0
    %285 = vmatmul.mubr.bf16.gmra.mrb[0].mxu0 %v180
    %v286 = vpop.f32.mrb[0].mxu0
    %v287 = vadd.f32 %v202, %v286
    %v288 = vpop.f32.mrb[0].mxu0
    %v289 = vpop.f32.mrb[0].mxu0
    %v290 = vadd.f32 %v202, %v289
    %v291 = vpop.f32.mrb[0].mxu0
    %292 = vdwg.mxu0
    %v293 = vpack.c.bf16 %v290, %v287
    %v295 = vunpack.c.l.b16 %v293
    %v296 = vunpack.c.h.b16 %v293
    %v297 = vpack.c.b16 %v295, %v295
    %v298 = vpack.c.b16 %v296, %v296
    %301 = vst [vmem:[#allocation8] sm:$0xf] %v297
    %302 = vst [vmem:[#allocation8 + $0x4] sm:$0xf] %v298
    // Predicated region
    $region34: #{_mlp_forward.1} parent=1 // pred_check
      _
    $region35: #{_mlp_forward.1} parent=1 // pred_check_branch
      %304 = sbr.rel (0) target = $region37
    $region36: #{_mlp_forward.1} parent=1 // pred_region
      %s306 = ssub.s32 128, 128
      %307 = vsyncadd [#allocation4], %s306
      %s308 = sshll.u32 [#allocation8], 4
      %s309 = int_to_ptr.vmem [resolvable:$true] %s308
      %314 = dma.vmem_to_hbm [thread:$0]  %s309, 128, %s5, [#allocation4], 64, 64, 4
    $region37: #{_mlp_forward.1} parent=1 // pred_fallthru
      _
    // Predicated region
    $region38: #{_mlp_forward.1} parent=1 // pred_check
      _
    $region39: #{_mlp_forward.1} parent=1 // pred_check_branch
      %316 = sbr.rel (0) target = $region41
    $region40: #{_mlp_forward.1} parent=1 // pred_region
      %317 = dma.done [#allocation4], 128
    $region41: #{_mlp_forward.1} parent=1 // pred_fallthru
      _
    %318 = vsyncpa [#allocation3], 1
    %319 = vsyncpa [#allocation6], 1
    %320 = vsyncpa [#allocation4], 1

</llo_original>
